<compile_context>
chip_gen: v7x
topology: tpu7x:2x2x1
jax: 0.10.0
libtpu: 0.0.40
codegen_flags: <defaults>
</compile_context>

<pallas_src>
import functools

import jax
import jax.numpy as jnp
from jax.experimental import pallas as pl
from jax.experimental.pallas import tpu as pltpu

FC1_UNITS = 128
FC2_UNITS = 64
OUT_PAD = 128          # lane-dense output width (wrapper slices back to action_size)
SUB = 128              # in-kernel compute sub-block (rows) to bound vreg pressure
BATCH_TILE = 512       # target DMA tile (rows) for large batches
SINGLE_TILE_MAX = 256  # batches up to this run as one tile, grid=(1,)


def _round_up(a, m):
    return (a + m - 1) // m * m


def actor_kernel(x_ref, w1_ref, b1_ref, w2_ref, b2_ref, w3_ref, b3_ref, o_ref):
    """Fused fc1->relu->fc2->relu->fc3->tanh on one batch tile.

    x and all weights arrive as bf16 (native MXU rate, half the DMA bytes);
    every dot accumulates in f32 on the MXU; bias add, relu and tanh run in
    f32 on the VPU/EUP.  Large tiles are processed in 128-row sub-blocks
    (static slices) so f32 intermediates stay close to the vreg file.
    """
    tb = x_ref.shape[0]
    w1 = w1_ref[...]
    b1 = b1_ref[...]
    w2 = w2_ref[...]
    b2 = b2_ref[...]
    w3 = w3_ref[...]
    b3 = b3_ref[...]

    if tb % SUB == 0 and tb > SUB:
        n_sub, rows = tb // SUB, SUB
    else:
        n_sub, rows = 1, tb

    for s in range(n_sub):  # static Python loop; all slices are static
        lo = s * rows
        x = x_ref[pl.ds(lo, rows), :]
        h1 = jnp.dot(x, w1, preferred_element_type=jnp.float32) + b1
        h1 = jnp.maximum(h1, 0.0)
        h2 = jnp.dot(h1.astype(jnp.bfloat16), w2,
                     preferred_element_type=jnp.float32) + b2
        h2 = jnp.maximum(h2, 0.0)
        y = jnp.dot(h2.astype(jnp.bfloat16), w3,
                    preferred_element_type=jnp.float32) + b3
        o_ref[pl.ds(lo, rows), :] = jnp.tanh(y).astype(o_ref.dtype)


def prepare_actor_params(params, out_pad=OUT_PAD):
    """One-time conversion of f32 torch-style params into kernel-ready form.

    Weights -> bf16 (halves HBM traffic, native MXU rate); the last layer is
    zero-padded to `out_pad` output columns so the kernel's final store is a
    full 128-lane tile (padded columns produce tanh(0)=0 and are sliced away).
    Do this once per weight update, not per forward call.
    """
    w1, b1, w2, b2, w3, b3 = params
    action_size = w3.shape[1]
    w3p = jnp.zeros((w3.shape[0], out_pad), jnp.float32).at[:, :action_size].set(w3)
    b3p = jnp.zeros((1, out_pad), jnp.float32).at[:, :action_size].set(b3)
    prepped = (
        w1.astype(jnp.bfloat16), b1.astype(jnp.float32),
        w2.astype(jnp.bfloat16), b2.astype(jnp.float32),
        w3p.astype(jnp.bfloat16), b3p,
    )
    return prepped, action_size


def _choose_tb(batch):
    """Pick a sublane-aligned batch tile.

    <=256 rows: one tile (minimum grid overhead).  Larger: ~512-row tiles,
    rounded to a multiple of 128 (enables in-kernel sub-blocking) with an even
    tile count so the "parallel" batch axis balances v7x's two TensorCores.
    """
    if batch <= SINGLE_TILE_MAX:
        return _round_up(max(batch, 16), 16)
    n = pl.cdiv(batch, BATCH_TILE)
    if n % 2:
        n += 1
    return _round_up(pl.cdiv(batch, n), SUB)


@functools.partial(jax.jit, static_argnums=(2,))
def actor_forward(x, prepped_params, action_size):
    """Run the fused actor MLP. x: (batch, state_size) -> (batch, action_size) f32."""
    w1, b1, w2, b2, w3, b3 = prepped_params
    batch, state_size = x.shape
    out_pad = w3.shape[1]

    x = x.astype(jnp.bfloat16)        # half the x DMA bytes; fuses with producer under jit
    tb = _choose_tb(batch)
    grid = (pl.cdiv(batch, tb),)      # no explicit pad: boundary blocks are masked by Pallas

    const = lambda i: (0, 0)          # weights/biases DMA'd once, VMEM-resident across steps

    out = pl.pallas_call(
        actor_kernel,
        out_shape=jax.ShapeDtypeStruct((batch, out_pad), jnp.bfloat16),
        grid=grid,
        in_specs=[
            pl.BlockSpec((tb, state_size), lambda i: (i, 0)),   # x: per-tile
            pl.BlockSpec(w1.shape, const),
            pl.BlockSpec(b1.shape, const),
            pl.BlockSpec(w2.shape, const),
            pl.BlockSpec(b2.shape, const),
            pl.BlockSpec(w3.shape, const),
            pl.BlockSpec(b3.shape, const),
        ],
        out_specs=pl.BlockSpec((tb, out_pad), lambda i: (i, 0)),
        compiler_params=pltpu.CompilerParams(
            dimension_semantics=("parallel",),   # shard batch tiles across TCs on v7x
        ),
    )(x, w1, b1, w2, b2, w3, b3)

    # bf16 tanh output (|y|<=1) keeps abs error ~4e-3; upcast + slice for the caller.
    return out[:, :action_size].astype(jnp.float32)


def init_actor_params(key, state_size, action_size):
    """Deterministic init mirroring Actor.reset_parameters().

    hidden_init() in the reference uses weight.size()[0] == out_features as
    "fan_in" (torch Linear weight is (out, in)), so the limits are
    1/sqrt(FC1_UNITS) and 1/sqrt(FC2_UNITS). Biases are filled with 0.1.
    Weights here are stored as (in, out), f32.
    """
    k1, k2, k3 = jax.random.split(key, 3)
    lim1 = 1.0 / jnp.sqrt(float(FC1_UNITS))
    lim2 = 1.0 / jnp.sqrt(float(FC2_UNITS))
    lim3 = 0.003
    w1 = jax.random.uniform(k1, (state_size, FC1_UNITS), jnp.float32, -lim1, lim1)
    w2 = jax.random.uniform(k2, (FC1_UNITS, FC2_UNITS), jnp.float32, -lim2, lim2)
    w3 = jax.random.uniform(k3, (FC2_UNITS, action_size), jnp.float32, -lim3, lim3)
    b1 = jnp.full((1, FC1_UNITS), 0.1, jnp.float32)
    b2 = jnp.full((1, FC2_UNITS), 0.1, jnp.float32)
    b3 = jnp.full((1, action_size), 0.1, jnp.float32)
    return (w1, b1, w2, b2, w3, b3)


def actor_ref(x, params):
    """Pure-JAX f32 reference for correctness check."""
    w1, b1, w2, b2, w3, b3 = params
    h1 = jnp.maximum(x @ w1 + b1, 0.0)
    h2 = jnp.maximum(h1 @ w2 + b2, 0.0)
    return jnp.tanh(h2 @ w3 + b3)


if __name__ == "__main__":
    state_size = 16
    action_size = 8

    key = jax.random.PRNGKey(0)
    pkey, xkey1, xkey2 = jax.random.split(key, 3)
    params = init_actor_params(pkey, state_size, action_size)
    prepped, act = prepare_actor_params(params)

    # Small batch: single 16-row tile, grid=(1,), boundary rows masked.
    x_small = jax.random.normal(xkey1, (2, state_size), jnp.float32)
    out_small = jax.block_until_ready(actor_forward(x_small, prepped, act))
    ref_small = actor_ref(x_small, params)
    assert out_small.shape == (2, action_size)
    assert jnp.allclose(out_small, ref_small, atol=2e-2), (
        float(jnp.max(jnp.abs(out_small - ref_small))))

    # Larger batch: multi-tile path (260 -> 2 tiles of 256, second tile partial,
    # in-kernel 128-row sub-blocking exercised).
    x_big = jax.random.normal(xkey2, (260, state_size), jnp.float32)
    out_big = jax.block_until_ready(actor_forward(x_big, prepped, act))
    ref_big = actor_ref(x_big, params)
    assert out_big.shape == (260, action_size)
    assert jnp.allclose(out_big, ref_big, atol=2e-2), (
        float(jnp.max(jnp.abs(out_big - ref_big))))

    print("KERNEL_OK")
</pallas_src>

<mosaic_0001>
module attributes {stable_mosaic.version = 11 : i64} {
  func.func @actor_kernel(%arg0: i32, %arg1: memref<16x16xbf16, #tpu.memory_space<vmem>>, %arg2: memref<16x128xbf16, #tpu.memory_space<vmem>>, %arg3: memref<1x128xf32, #tpu.memory_space<vmem>>, %arg4: memref<128x64xbf16, #tpu.memory_space<vmem>>, %arg5: memref<1x64xf32, #tpu.memory_space<vmem>>, %arg6: memref<64x128xbf16, #tpu.memory_space<vmem>>, %arg7: memref<1x128xf32, #tpu.memory_space<vmem>>, %arg8: memref<16x128xbf16, #tpu.memory_space<vmem>>) attributes {dimension_semantics = [#tpu.dimension_semantics<parallel>], iteration_bounds = array<i64: 1>, scalar_prefetch = 0 : i64, scratch_operands = 0 : i64, tpu.core_type = #tpu.core_type<tc>, window_params = [{transform_indices = @transform_0, window_bounds = array<i64: 16, 16>}, {pipeline_mode = #tpu.pipeline_mode<synchronous>, transform_indices = @transform_1, window_bounds = array<i64: 16, 128>}, {pipeline_mode = #tpu.pipeline_mode<synchronous>, transform_indices = @transform_2, window_bounds = array<i64: 1, 128>}, {pipeline_mode = #tpu.pipeline_mode<synchronous>, transform_indices = @transform_3, window_bounds = array<i64: 128, 64>}, {pipeline_mode = #tpu.pipeline_mode<synchronous>, transform_indices = @transform_4, window_bounds = array<i64: 1, 64>}, {pipeline_mode = #tpu.pipeline_mode<synchronous>, transform_indices = @transform_5, window_bounds = array<i64: 64, 128>}, {pipeline_mode = #tpu.pipeline_mode<synchronous>, transform_indices = @transform_6, window_bounds = array<i64: 1, 128>}, {transform_indices = @transform_7, window_bounds = array<i64: 16, 128>}]} {
    %c0 = arith.constant 0 : index
    %c0_0 = arith.constant 0 : index
    %0 = vector.load %arg2[%c0, %c0_0] : memref<16x128xbf16, #tpu.memory_space<vmem>>, vector<16x128xbf16>
    %c0_1 = arith.constant 0 : index
    %c0_2 = arith.constant 0 : index
    %1 = vector.load %arg3[%c0_1, %c0_2] : memref<1x128xf32, #tpu.memory_space<vmem>>, vector<1x128xf32>
    %c0_3 = arith.constant 0 : index
    %c0_4 = arith.constant 0 : index
    %2 = vector.load %arg4[%c0_3, %c0_4] : memref<128x64xbf16, #tpu.memory_space<vmem>>, vector<128x64xbf16>
    %c0_5 = arith.constant 0 : index
    %c0_6 = arith.constant 0 : index
    %3 = vector.load %arg5[%c0_5, %c0_6] : memref<1x64xf32, #tpu.memory_space<vmem>>, vector<1x64xf32>
    %c0_7 = arith.constant 0 : index
    %c0_8 = arith.constant 0 : index
    %4 = vector.load %arg6[%c0_7, %c0_8] : memref<64x128xbf16, #tpu.memory_space<vmem>>, vector<64x128xbf16>
    %c0_9 = arith.constant 0 : index
    %c0_10 = arith.constant 0 : index
    %5 = vector.load %arg7[%c0_9, %c0_10] : memref<1x128xf32, #tpu.memory_space<vmem>>, vector<1x128xf32>
    %c0_11 = arith.constant 0 : index
    %c0_12 = arith.constant 0 : index
    %6 = vector.load %arg1[%c0_11, %c0_12] : memref<16x16xbf16, #tpu.memory_space<vmem>>, vector<16x16xbf16>
    %cst = arith.constant dense<0.000000e+00> : vector<16x128xf32>
    %7 = tpu.matmul %6, %0, %cst {dimension_numbers = #tpu.dot_dimension_numbers<[1], [0], [0], [1], [0, 0, 1, 1], [], []>} : vector<16x16xbf16>, vector<16x128xbf16>, vector<16x128xf32> -> vector<16x128xf32>
    %8 = vector.broadcast %1 : vector<1x128xf32> to vector<16x128xf32>
    %9 = arith.addf %7, %8 : vector<16x128xf32>
    %cst_13 = arith.constant 0.000000e+00 : f32
    %10 = vector.broadcast %cst_13 : f32 to vector<16x128xf32>
    %11 = arith.maximumf %9, %10 : vector<16x128xf32>
    %12 = arith.truncf %11 : vector<16x128xf32> to vector<16x128xbf16>
    %cst_14 = arith.constant dense<0.000000e+00> : vector<16x64xf32>
    %13 = tpu.matmul %12, %2, %cst_14 {dimension_numbers = #tpu.dot_dimension_numbers<[1], [0], [0], [1], [0, 0, 1, 1], [], []>} : vector<16x128xbf16>, vector<128x64xbf16>, vector<16x64xf32> -> vector<16x64xf32>
    %14 = vector.broadcast %3 : vector<1x64xf32> to vector<16x64xf32>
    %15 = arith.addf %13, %14 : vector<16x64xf32>
    %cst_15 = arith.constant 0.000000e+00 : f32
    %16 = vector.broadcast %cst_15 : f32 to vector<16x64xf32>
    %17 = arith.maximumf %15, %16 : vector<16x64xf32>
    %18 = arith.truncf %17 : vector<16x64xf32> to vector<16x64xbf16>
    %cst_16 = arith.constant dense<0.000000e+00> : vector<16x128xf32>
    %19 = tpu.matmul %18, %4, %cst_16 {dimension_numbers = #tpu.dot_dimension_numbers<[1], [0], [0], [1], [0, 0, 1, 1], [], []>} : vector<16x64xbf16>, vector<64x128xbf16>, vector<16x128xf32> -> vector<16x128xf32>
    %20 = vector.broadcast %5 : vector<1x128xf32> to vector<16x128xf32>
    %21 = arith.addf %19, %20 : vector<16x128xf32>
    %22 = math.tanh %21 : vector<16x128xf32>
    %23 = arith.truncf %22 : vector<16x128xf32> to vector<16x128xbf16>
    %c0_17 = arith.constant 0 : index
    %c0_18 = arith.constant 0 : index
    %24 = vector.load %arg8[%c0_17, %c0_18] : memref<16x128xbf16, #tpu.memory_space<vmem>>, vector<16x128xbf16>
    tpu.vector_store %arg8[%c0_17, %c0_18], %23 {strides = array<i32>} : memref<16x128xbf16, #tpu.memory_space<vmem>>, vector<16x128xbf16>,
    return
  }
  func.func @transform_0(%arg0: i32) -> (i32, i32) {
    %c0_i32 = arith.constant 0 : i32
    %c0_i32_0 = arith.constant 0 : i32
    return %arg0, %c0_i32 : i32, i32
  }
  func.func @transform_1(%arg0: i32) -> (i32, i32) {
    %c0_i32 = arith.constant 0 : i32
    %c0_i32_0 = arith.constant 0 : i32
    %c0_i32_1 = arith.constant 0 : i32
    return %c0_i32, %c0_i32_0 : i32, i32
  }
  func.func @transform_2(%arg0: i32) -> (i32, i32) {
    %c0_i32 = arith.constant 0 : i32
    %c0_i32_0 = arith.constant 0 : i32
    %c0_i32_1 = arith.constant 0 : i32
    return %c0_i32, %c0_i32_0 : i32, i32
  }
  func.func @transform_3(%arg0: i32) -> (i32, i32) {
    %c0_i32 = arith.constant 0 : i32
    %c0_i32_0 = arith.constant 0 : i32
    %c0_i32_1 = arith.constant 0 : i32
    return %c0_i32, %c0_i32_0 : i32, i32
  }
  func.func @transform_4(%arg0: i32) -> (i32, i32) {
    %c0_i32 = arith.constant 0 : i32
    %c0_i32_0 = arith.constant 0 : i32
    %c0_i32_1 = arith.constant 0 : i32
    return %c0_i32, %c0_i32_0 : i32, i32
  }
  func.func @transform_5(%arg0: i32) -> (i32, i32) {
    %c0_i32 = arith.constant 0 : i32
    %c0_i32_0 = arith.constant 0 : i32
    %c0_i32_1 = arith.constant 0 : i32
    return %c0_i32, %c0_i32_0 : i32, i32
  }
  func.func @transform_6(%arg0: i32) -> (i32, i32) {
    %c0_i32 = arith.constant 0 : i32
    %c0_i32_0 = arith.constant 0 : i32
    %c0_i32_1 = arith.constant 0 : i32
    return %c0_i32, %c0_i32_0 : i32, i32
  }
  func.func @transform_7(%arg0: i32) -> (i32, i32) {
    %c0_i32 = arith.constant 0 : i32
    %c0_i32_0 = arith.constant 0 : i32
    return %arg0, %c0_i32 : i32, i32
  }
}

</mosaic_0001>

<llo_original>
// kernel: actor_forward.1
$region0: #{actor_forward.1}
  #allocation0 [shape = 'u32[]', space=smem, size = 0x4, offset = 0x4, fixed_abs, tag = 'smem constant byte address 0x4 - core index']
  #allocation1 [shape = 'u32[144,128]{1,0:T(1,128)}', space=vmem, size = 0x12000, scoped, tag = 'internal scratch']
  %s0 = inlined_call_operand.vmem [shape: bf16[2,16], index: 0, kind: input, shape index: {}]
  %s1 = inlined_call_operand.vmem [shape: bf16[16,128], index: 1, kind: input, shape index: {}]
  %s2 = inlined_call_operand.vmem [shape: f32[1,128], index: 2, kind: input, shape index: {}]
  %s3 = inlined_call_operand.vmem [shape: bf16[128,64], index: 3, kind: input, shape index: {}]
  %s4 = inlined_call_operand.vmem [shape: f32[1,64], index: 4, kind: input, shape index: {}]
  %s5 = inlined_call_operand.vmem [shape: bf16[64,128], index: 5, kind: input, shape index: {}]
  %s6 = inlined_call_operand.vmem [shape: f32[1,128], index: 6, kind: input, shape index: {}]
  %s7 = inlined_call_operand.vmem [shape: bf16[2,128], index: 7, kind: output, shape index: {}]
  %s8 = sld [smem:[#allocation0]]
  $region68: #{actor_forward.1} parent=0
    _
  %s10 = ssub.s32 1, %s8
  %s11 = scalar_select 0, %s10, %s8
  $region1: #{actor_forward.1} parent=0
    #allocation2 [shape = 'u8[4096]{0}', space=vmem, size = 0x1000, scoped, tag = 'output window, operand 0, single buffered']
    // Predicated region
    $region2: #{actor_forward.1} parent=1 // pred_check
      _
    $region3: #{actor_forward.1} parent=1 // pred_check_branch
      %13 = sbr.rel (0) target = $region5
    $region4: #{actor_forward.1} parent=1 // pred_region
      _
    $region5: #{actor_forward.1} parent=1 // pred_fallthru
      _
    // Predicated region
    $region6: #{actor_forward.1} parent=1 // pred_check
      _
    $region7: #{actor_forward.1} parent=1 // pred_check_branch
      %15 = sbr.rel (0) target = $region9
    $region8: #{actor_forward.1} parent=1 // pred_region
      _
    $region9: #{actor_forward.1} parent=1 // pred_fallthru
      _
    // Predicated region
    $region10: #{actor_forward.1} parent=1 // pred_check
      _
    $region11: #{actor_forward.1} parent=1 // pred_check_branch
      %17 = sbr.rel (0) target = $region13
    $region12: #{actor_forward.1} parent=1 // pred_region
      _
    $region13: #{actor_forward.1} parent=1 // pred_fallthru
      _
    // Predicated region
    $region14: #{actor_forward.1} parent=1 // pred_check
      _
    $region15: #{actor_forward.1} parent=1 // pred_check_branch
      %19 = sbr.rel (0) target = $region17
    $region16: #{actor_forward.1} parent=1 // pred_region
      _
    $region17: #{actor_forward.1} parent=1 // pred_fallthru
      _
    // Predicated region
    $region18: #{actor_forward.1} parent=1 // pred_check
      _
    $region19: #{actor_forward.1} parent=1 // pred_check_branch
      %21 = sbr.rel (0) target = $region21
    $region20: #{actor_forward.1} parent=1 // pred_region
      _
    $region21: #{actor_forward.1} parent=1 // pred_fallthru
      _
    // Predicated region
    $region22: #{actor_forward.1} parent=1 // pred_check
      _
    $region23: #{actor_forward.1} parent=1 // pred_check_branch
      %23 = sbr.rel (0) target = $region25
    $region24: #{actor_forward.1} parent=1 // pred_region
      _
    $region25: #{actor_forward.1} parent=1 // pred_fallthru
      _
    // Predicated region
    $region26: #{actor_forward.1} parent=1 // pred_check
      _
    $region27: #{actor_forward.1} parent=1 // pred_check_branch
      %25 = sbr.rel (0) target = $region29
    $region28: #{actor_forward.1} parent=1 // pred_region
      _
    $region29: #{actor_forward.1} parent=1 // pred_fallthru
      _
    %v27 = vld [vmem:[%s1] sm:$0xf]
    %v28 = vld [vmem:[%s1 + $0x4] sm:$0xf]
    %v29 = vld [vmem:[%s2] sm:$0x1]
    %v30 = vld [vmem:[%s3] sm:$0xf]
    %v31 = vld [vmem:[%s3 + $0x4] sm:$0xf]
    %v32 = vld [vmem:[%s3 + $0x8] sm:$0xf]
    %v33 = vld [vmem:[%s3 + $0xc] sm:$0xf]
    %v34 = vld [vmem:[%s3 + $0x10] sm:$0xf]
    %v35 = vld [vmem:[%s3 + $0x14] sm:$0xf]
    %v36 = vld [vmem:[%s3 + $0x18] sm:$0xf]
    %v37 = vld [vmem:[%s3 + $0x1c] sm:$0xf]
    %v38 = vld [vmem:[%s3 + $0x20] sm:$0xf]
    %v39 = vld [vmem:[%s3 + $0x24] sm:$0xf]
    %v40 = vld [vmem:[%s3 + $0x28] sm:$0xf]
    %v41 = vld [vmem:[%s3 + $0x2c] sm:$0xf]
    %v42 = vld [vmem:[%s3 + $0x30] sm:$0xf]
    %v43 = vld [vmem:[%s3 + $0x34] sm:$0xf]
    %v44 = vld [vmem:[%s3 + $0x38] sm:$0xf]
    %v45 = vld [vmem:[%s3 + $0x3c] sm:$0xf]
    %v46 = vld [vmem:[%s4] sm:$0x1]
    %v47 = vld [vmem:[%s5] sm:$0xf]
    %v48 = vld [vmem:[%s5 + $0x4] sm:$0xf]
    %v49 = vld [vmem:[%s5 + $0x8] sm:$0xf]
    %v50 = vld [vmem:[%s5 + $0xc] sm:$0xf]
    %v51 = vld [vmem:[%s5 + $0x10] sm:$0xf]
    %v52 = vld [vmem:[%s5 + $0x14] sm:$0xf]
    %v53 = vld [vmem:[%s5 + $0x18] sm:$0xf]
    %v54 = vld [vmem:[%s5 + $0x1c] sm:$0xf]
    %v55 = vld [vmem:[%s6] sm:$0x1]
    %v56 = vld [vmem:[%s0] sm:$0x1]
    %v57 = vld [vmem:[%s0 + $0x1] sm:$0x1]
    %v58 = vld [vmem:[%s0 + $0x2] sm:$0x1]
    %v59 = vld [vmem:[%s0 + $0x3] sm:$0x1]
    %v60 = vld [vmem:[%s0 + $0x4] sm:$0x1]
    %v61 = vld [vmem:[%s0 + $0x5] sm:$0x1]
    %v62 = vld [vmem:[%s0 + $0x6] sm:$0x1]
    %v63 = vld [vmem:[%s0 + $0x7] sm:$0x1]
    %v65 = vlaneseq
    %v66 = vshrl.u32 %v65, 7
    %v67 = vsub.s32 0, %v66
    %v68 = vrot.slane %v29, %v67
    %v78 = vcombine.low %v56, %v57
    %v79 = vcombine.low %v58, %v59
    %v80 = vcombine.low %v60, %v61
    %v81 = vcombine.low %v62, %v63
    %v83 = vunpack.c.l.s4 1966171168
    %v84 = vunpack.c.0.s8 %v83
    %v85 = vlaneseq
    %v86 = vshrl.u32 %v85, 7
    %v87 = vsub.s32 %v84, %v86
    %v88 = vrot.slane %v78, %v87
    %v90 = vunpack.c.l.s4 1966171168
    %v91 = vunpack.c.0.s8 %v90
    %v92 = vlaneseq
    %v93 = vshrl.u32 %v92, 7
    %v94 = vsub.s32 %v91, %v93
    %v95 = vrot.slane %v79, %v94
    %v97 = vunpack.c.l.s4 1966171168
    %v98 = vunpack.c.0.s8 %v97
    %v99 = vlaneseq
    %v100 = vshrl.u32 %v99, 7
    %v101 = vsub.s32 %v98, %v100
    %v102 = vrot.slane %v80, %v101
    %v104 = vunpack.c.l.s4 1966171168
    %v105 = vunpack.c.0.s8 %v104
    %v106 = vlaneseq
    %v107 = vshrl.u32 %v106, 7
    %v108 = vsub.s32 %v105, %v107
    %v109 = vrot.slane %v81, %v108
    %v110 = vcombine.low %v88, %v95
    %v111 = vcombine.low %v102, %v109
    %v113 = vunpack.c.l.s4 1966171168
    %v114 = vunpack.c.0.s8 %v113
    %v115 = vlaneseq
    %v116 = vshrl.u32 %v115, 7
    %v117 = vsub.s32 %v114, %v116
    %v118 = vrot.slane %v110, %v117
    %v120 = vunpack.c.l.s4 1966171168
    %v121 = vunpack.c.0.s8 %v120
    %v122 = vlaneseq
    %v123 = vshrl.u32 %v122, 7
    %v124 = vsub.s32 %v121, %v123
    %v125 = vrot.slane %v111, %v124
    %v126 = vcombine.low %v118, %v125
    %v129 = vunpack.c.l.b16 %v27
    %v130 = vunpack.c.l.b16 %v28
    %v131 = vpack.c.b16 %v130, %v129
    %vm133 = vcmask 130048
    %v135 = vsel %vm133, %v126, 0
    %137 = vmatprep.subr.bf16.mxu0 0
    %138 = vmatpush1.bf16.msra.mxu0 %v131
    %139 = vmatprep.subr.bf16.mxu0 0
    %140 = vmatpush1.bf16.msra.mxu0 0
    %141 = vmatprep.subr.bf16.mxu0 0
    %142 = vmatpush1.bf16.msra.mxu0 0
    %143 = vmatprep.subr.bf16.mxu0 0
    %144 = vmatpush1.bf16.msra.mxu0 0
    %145 = vmatprep.subr.bf16.mxu0 0
    %146 = vmatpush1.bf16.msra.mxu0 0
    %147 = vmatprep.subr.bf16.mxu0 0
    %148 = vmatpush1.bf16.msra.mxu0 0
    %149 = vmatprep.subr.bf16.mxu0 0
    %150 = vmatpush1.bf16.msra.mxu0 0
    %151 = vmatprep.subr.bf16.mxu0 0
    %152 = vmatpush1.bf16.msra.mxu0 0
    %153 = vmatprep.subr.bf16.mxu0 0
    %154 = vmatpush1.bf16.msra.mxu0 0
    %155 = vmatprep.subr.bf16.mxu0 0
    %156 = vmatpush1.bf16.msra.mxu0 0
    %157 = vmatprep.subr.bf16.mxu0 0
    %158 = vmatpush1.bf16.msra.mxu0 0
    %159 = vmatprep.subr.bf16.mxu0 0
    %160 = vmatpush1.bf16.msra.mxu0 0
    %161 = vmatprep.subr.bf16.mxu0 0
    %162 = vmatpush1.bf16.msra.mxu0 0
    %163 = vmatprep.subr.bf16.mxu0 0
    %164 = vmatpush1.bf16.msra.mxu0 0
    %165 = vmatprep.subr.bf16.mxu0 0
    %166 = vmatpush1.bf16.msra.mxu0 0
    %167 = vmatprep.subr.bf16.mxu0 0
    %168 = vmatpush1.bf16.msra.mxu0 0
    %169 = vmatprep.mubr.bf16.mxu0 0
    %170 = vmatmul.mubr.bf16.gmra.mrb[0].mxu0 %v135
    %v171 = vpop.f32.mrb[0].mxu0
    %v172 = vadd.f32 %v68, %v171
    %v173 = vpop.f32.mrb[0].mxu0
    %v174 = vpop.f32.mrb[0].mxu0
    %v175 = vadd.f32 %v68, %v174
    %v176 = vpop.f32.mrb[0].mxu0
    %177 = vdwg.mxu0
    %v178 = vmax.f32 %v172, 0.0
    %v179 = vmax.f32 %v175, 0.0
    %v180 = vpack.c.bf16 %v179, %v178
    %v182 = vlaneseq
    %v183 = vshrl.u32 %v182, 7
    %v184 = vsub.s32 0, %v183
    %v185 = vrot.slane %v46, %v184
    %v203 = vunpack.c.l.b16 %v30
    %v204 = vunpack.c.l.b16 %v31
    %v205 = vunpack.c.l.b16 %v32
    %v206 = vunpack.c.l.b16 %v33
    %v207 = vunpack.c.l.b16 %v34
    %v208 = vunpack.c.l.b16 %v35
    %v209 = vunpack.c.l.b16 %v36
    %v210 = vunpack.c.l.b16 %v37
    %v211 = vunpack.c.l.b16 %v38
    %v212 = vunpack.c.l.b16 %v39
    %v213 = vunpack.c.l.b16 %v40
    %v214 = vunpack.c.l.b16 %v41
    %v215 = vunpack.c.l.b16 %v42
    %v216 = vunpack.c.l.b16 %v43
    %v217 = vunpack.c.l.b16 %v44
    %v218 = vunpack.c.l.b16 %v45
    %v219 = vpack.c.b16 %v204, %v203
    %v220 = vpack.c.b16 %v206, %v205
    %v221 = vpack.c.b16 %v208, %v207
    %v222 = vpack.c.b16 %v210, %v209
    %v223 = vpack.c.b16 %v212, %v211
    %v224 = vpack.c.b16 %v214, %v213
    %v225 = vpack.c.b16 %v216, %v215
    %v226 = vpack.c.b16 %v218, %v217
    %235 = vmatprep.subr.bf16.mxu0 0
    %236 = vmatpush1.bf16.msra.mxu0 %v219
    %237 = vmatprep.subr.bf16.mxu0 0
    %238 = vmatpush1.bf16.msra.mxu0 %v220
    %239 = vmatprep.subr.bf16.mxu0 0
    %240 = vmatpush1.bf16.msra.mxu0 %v221
    %241 = vmatprep.subr.bf16.mxu0 0
    %242 = vmatpush1.bf16.msra.mxu0 %v222
    %243 = vmatprep.subr.bf16.mxu0 0
    %244 = vmatpush1.bf16.msra.mxu0 %v223
    %245 = vmatprep.subr.bf16.mxu0 0
    %246 = vmatpush1.bf16.msra.mxu0 %v224
    %247 = vmatprep.subr.bf16.mxu0 0
    %248 = vmatpush1.bf16.msra.mxu0 %v225
    %249 = vmatprep.subr.bf16.mxu0 0
    %250 = vmatpush1.bf16.msra.mxu0 %v226
    %251 = vmatprep.subr.bf16.mxu0 0
    %252 = vmatpush1.bf16.msra.mxu0 0
    %253 = vmatprep.subr.bf16.mxu0 0
    %254 = vmatpush1.bf16.msra.mxu0 0
    %255 = vmatprep.subr.bf16.mxu0 0
    %256 = vmatpush1.bf16.msra.mxu0 0
    %257 = vmatprep.subr.bf16.mxu0 0
    %258 = vmatpush1.bf16.msra.mxu0 0
    %259 = vmatprep.subr.bf16.mxu0 0
    %260 = vmatpush1.bf16.msra.mxu0 0
    %261 = vmatprep.subr.bf16.mxu0 0
    %262 = vmatpush1.bf16.msra.mxu0 0
    %263 = vmatprep.subr.bf16.mxu0 0
    %264 = vmatpush1.bf16.msra.mxu0 0
    %265 = vmatprep.subr.bf16.mxu0 0
    %266 = vmatpush1.bf16.msra.mxu0 0
    %267 = vmatprep.mubr.bf16.mxu0 0
    %268 = vmatmul.mubr.bf16.gmra.mrb[0].mxu0 %v180
    %v269 = vpop.f32.mrb[0].mxu0
    %v270 = vadd.f32 %v185, %v269
    %v271 = vpop.f32.mrb[0].mxu0
    %v272 = vpop.f32.mrb[0].mxu0
    %v273 = vadd.f32 %v185, %v272
    %v274 = vpop.f32.mrb[0].mxu0
    %275 = vdwg.mxu0
    %v276 = vmax.f32 %v270, 0.0
    %v277 = vmax.f32 %v273, 0.0
    %v278 = vpack.c.bf16 %v277, %v276
    %v280 = vlaneseq
    %v281 = vshrl.u32 %v280, 7
    %v282 = vsub.s32 0, %v281
    %v283 = vrot.slane %v55, %v282
    %v293 = vunpack.c.l.b16 %v47
    %v294 = vunpack.c.l.b16 %v48
    %v295 = vunpack.c.l.b16 %v49
    %v296 = vunpack.c.l.b16 %v50
    %v297 = vunpack.c.l.b16 %v51
    %v298 = vunpack.c.l.b16 %v52
    %v299 = vunpack.c.l.b16 %v53
    %v300 = vunpack.c.l.b16 %v54
    %v301 = vpack.c.b16 %v294, %v293
    %v302 = vpack.c.b16 %v296, %v295
    %v303 = vpack.c.b16 %v298, %v297
    %v304 = vpack.c.b16 %v300, %v299
    %vm309 = vcmask 523264
    %v311 = vsel %vm309, %v278, 0
    %313 = vmatprep.subr.bf16.mxu0 0
    %314 = vmatpush1.bf16.msra.mxu0 %v301
    %315 = vmatprep.subr.bf16.mxu0 0
    %316 = vmatpush1.bf16.msra.mxu0 %v302
    %317 = vmatprep.subr.bf16.mxu0 0
    %318 = vmatpush1.bf16.msra.mxu0 %v303
    %319 = vmatprep.subr.bf16.mxu0 0
    %320 = vmatpush1.bf16.msra.mxu0 %v304
    %321 = vmatprep.subr.bf16.mxu0 0
    %322 = vmatpush1.bf16.msra.mxu0 0
    %323 = vmatprep.subr.bf16.mxu0 0
    %324 = vmatpush1.bf16.msra.mxu0 0
    %325 = vmatprep.subr.bf16.mxu0 0
    %326 = vmatpush1.bf16.msra.mxu0 0
    %327 = vmatprep.subr.bf16.mxu0 0
    %328 = vmatpush1.bf16.msra.mxu0 0
    %329 = vmatprep.subr.bf16.mxu0 0
    %330 = vmatpush1.bf16.msra.mxu0 0
    %331 = vmatprep.subr.bf16.mxu0 0
    %332 = vmatpush1.bf16.msra.mxu0 0
    %333 = vmatprep.subr.bf16.mxu0 0
    %334 = vmatpush1.bf16.msra.mxu0 0
    %335 = vmatprep.subr.bf16.mxu0 0
    %336 = vmatpush1.bf16.msra.mxu0 0
    %337 = vmatprep.subr.bf16.mxu0 0
    %338 = vmatpush1.bf16.msra.mxu0 0
    %339 = vmatprep.subr.bf16.mxu0 0
    %340 = vmatpush1.bf16.msra.mxu0 0
    %341 = vmatprep.subr.bf16.mxu0 0
    %342 = vmatpush1.bf16.msra.mxu0 0
    %343 = vmatprep.subr.bf16.mxu0 0
    %344 = vmatpush1.bf16.msra.mxu0 0
    %345 = vmatprep.mubr.bf16.mxu0 0
    %346 = vmatmul.mubr.bf16.gmra.mrb[0].mxu0 %v311
    %v347 = vpop.f32.mrb[0].mxu0
    %v348 = vadd.f32 %v283, %v347
    %v349 = vpop.f32.mrb[0].mxu0
    %v350 = vpop.f32.mrb[0].mxu0
    %v351 = vadd.f32 %v283, %v350
    %v352 = vpop.f32.mrb[0].mxu0
    %353 = vdwg.mxu0
    %v354 = vtanh.pop %v348
    %v355 = vtanh.pop %v351
    %v356 = vpack.c.bf16 %v355, %v354
    %v358 = vcombine.high %v356, %v356
    %v360 = vunpack.c.l.s4 1966171168
    %v361 = vunpack.c.0.s8 %v360
    %v362 = vlaneseq
    %v363 = vshrl.u32 %v362, 7
    %v364 = vsub.s32 %v361, %v363
    %v365 = vrot.slane %v356, %v364
    %v367 = vunpack.c.l.s4 1966171168
    %v368 = vunpack.c.0.s8 %v367
    %v369 = vlaneseq
    %v370 = vshrl.u32 %v369, 7
    %v371 = vsub.s32 %v368, %v370
    %v372 = vrot.slane %v358, %v371
    %v373 = vcombine.high %v365, %v365
    %v374 = vcombine.high %v372, %v372
    %v376 = vunpack.c.l.s4 1966171168
    %v377 = vunpack.c.0.s8 %v376
    %v378 = vlaneseq
    %v379 = vshrl.u32 %v378, 7
    %v380 = vsub.s32 %v377, %v379
    %v381 = vrot.slane %v365, %v380
    %v383 = vunpack.c.l.s4 1966171168
    %v384 = vunpack.c.0.s8 %v383
    %v385 = vlaneseq
    %v386 = vshrl.u32 %v385, 7
    %v387 = vsub.s32 %v384, %v386
    %v388 = vrot.slane %v372, %v387
    %v390 = vunpack.c.l.s4 1966171168
    %v391 = vunpack.c.0.s8 %v390
    %v392 = vlaneseq
    %v393 = vshrl.u32 %v392, 7
    %v394 = vsub.s32 %v391, %v393
    %v395 = vrot.slane %v373, %v394
    %v397 = vunpack.c.l.s4 1966171168
    %v398 = vunpack.c.0.s8 %v397
    %v399 = vlaneseq
    %v400 = vshrl.u32 %v399, 7
    %v401 = vsub.s32 %v398, %v400
    %v402 = vrot.slane %v374, %v401
    %v403 = vcombine.high %v381, %v381
    %v404 = vcombine.high %v388, %v388
    %v405 = vcombine.high %v395, %v395
    %v406 = vcombine.high %v402, %v402
    %415 = vst [vmem:[#allocation2] sm:$0x1] %v381
    %416 = vst [vmem:[#allocation2 + $0x1] sm:$0x1] %v395
    %417 = vst [vmem:[#allocation2 + $0x2] sm:$0x1] %v403
    %418 = vst [vmem:[#allocation2 + $0x3] sm:$0x1] %v405
    %419 = vst [vmem:[#allocation2 + $0x4] sm:$0x1] %v388
    %420 = vst [vmem:[#allocation2 + $0x5] sm:$0x1] %v402
    %421 = vst [vmem:[#allocation2 + $0x6] sm:$0x1] %v404
    %422 = vst [vmem:[#allocation2 + $0x7] sm:$0x1] %v406
    // Predicated region
    $region30: #{actor_forward.1} parent=1 // pred_check
      _
    $region31: #{actor_forward.1} parent=1 // pred_check_branch
      %424 = sbr.rel (0) target = $region33
    $region32: #{actor_forward.1} parent=1 // pred_region
      // Predicated region
      $region34: #{actor_forward.1} parent=32 // pred_check
        _
      $region35: #{actor_forward.1} parent=32 // pred_check_branch
        %426 = sbr.rel (0) target = $region37
      $region36: #{actor_forward.1} parent=32 // pred_region
        // Predicated region
        $region38: #{actor_forward.1} parent=36 // pred_check
          _
        $region39: #{actor_forward.1} parent=36 // pred_check_branch
          %428 = sbr.rel target = $region41
        $region40: #{actor_forward.1} parent=36 // pred_region
          // Predicated region
          $region53: #{actor_forward.1} parent=40 // pred_check
            _
          $region54: #{actor_forward.1} parent=40 // pred_check_branch
            %443 = sbr.rel (0) target = $region56
          $region55: #{actor_forward.1} parent=40 // pred_region
            loop: start=0, step=1, limit=1
            $region57: #{actor_forward.1} parent=55 // loop_pre_header
              _
            $region58: #{actor_forward.1} parent=55 // loop_header
              %s446 = sphi 0, %s450
              %p447 = scmp.ge.s32.totalorder %s446, 1
              %s451 = sphi [#allocation2], [#allocation2]
              %s452 = sphi %s7, %s7
            $region59: #{actor_forward.1} parent=55 // loop_header_branch
              %449 = sbr.rel (%p447) target = $region63
            $region60: #{actor_forward.1} parent=55 // loop_body
              %v453 = vld [vmem:[%s451] sm:$0x1]
              %454 = vst [vmem:[%s452] sm:$0x1] %v453
            $region61: #{actor_forward.1} parent=55 // loop_footer
              %s450 = sadd.s32 1, %s446
            $region62: #{actor_forward.1} parent=55 // loop_footer_branch
              %445 = sbr.rel target = $region58
            $region63: #{actor_forward.1} parent=55 // loop_exit
              _
          $region56: #{actor_forward.1} parent=40 // pred_fallthru
            _
        $region41: #{actor_forward.1} parent=36 // pred_fallthru
          _
        // Predicated region
        $region42: #{actor_forward.1} parent=36 // pred_check
          _
        $region43: #{actor_forward.1} parent=36 // pred_check_branch
          %430 = sbr.rel (0) target = $region45
        $region44: #{actor_forward.1} parent=36 // pred_region
          loop: start=0, step=1, limit=1
          $region46: #{actor_forward.1} parent=44 // loop_pre_header
            _
          $region47: #{actor_forward.1} parent=44 // loop_header
            %s433 = sphi 0, %s437
            %p434 = scmp.ge.s32.totalorder %s433, 1
            %s438 = sphi [#allocation2], [#allocation2]
            %s439 = sphi %s7, %s7
          $region48: #{actor_forward.1} parent=44 // loop_header_branch
            %436 = sbr.rel (%p434) target = $region52
          $region49: #{actor_forward.1} parent=44 // loop_body
            %v440 = vld [vmem:[%s438] sm:$0x1]
            %441 = vst [vmem:[%s439] sm:$0x1] %v440
          $region50: #{actor_forward.1} parent=44 // loop_footer
            %s437 = sadd.s32 1, %s433
          $region51: #{actor_forward.1} parent=44 // loop_footer_branch
            %432 = sbr.rel target = $region47
          $region52: #{actor_forward.1} parent=44 // loop_exit
            _
        $region45: #{actor_forward.1} parent=36 // pred_fallthru
          _
      $region37: #{actor_forward.1} parent=32 // pred_fallthru
        _
      %455 = vnop
    $region33: #{actor_forward.1} parent=1 // pred_fallthru
      _
    // Predicated region
    $region64: #{actor_forward.1} parent=1 // pred_check
      _
    $region65: #{actor_forward.1} parent=1 // pred_check_branch
      %457 = sbr.rel (0) target = $region67
    $region66: #{actor_forward.1} parent=1 // pred_region
      _
    $region67: #{actor_forward.1} parent=1 // pred_fallthru
      _

</llo_original>
